<compile_context>
chip_gen: v6e
topology: v6e:2x2x1
jax: 0.10.0
libtpu: 0.0.40
codegen_flags: <defaults>
</compile_context>

<pallas_src>
import functools

import jax
import jax.numpy as jnp
from jax.experimental import pallas as pl
from jax.experimental.pallas import tpu as pltpu


_LANE_CANDIDATES = (4096, 2048, 1024, 512, 256, 128)
_TARGET_BLOCK_BYTES = 8 * 1024 * 1024   # per array per grid step
_MIN_PIPELINE_BYTES = 1 << 20           # arrays above this get >= _MIN_GRID_STEPS
_MIN_GRID_STEPS = 4                     # keep the DMA pipeline busy + feed both v7x TCs


def _softplus_kernel(x_ref, o_ref, *, beta, threshold):
    x = x_ref[...]
    # where(beta*x > threshold, x, log(1 + exp(beta*x)) / beta)  -- module's formula.
    if beta == 1.0:
        scaled = x
        soft = jnp.log(1.0 + jnp.exp(x))
    else:
        scaled = beta * x
        soft = jnp.log(1.0 + jnp.exp(scaled)) * (1.0 / beta)  # multiply, not divide
    o_ref[...] = jnp.where(scaled > threshold, x, soft)


def _softplus_xla(x, beta, threshold):
    # Literal module formula; used only for (< 128 element) tails / tiny inputs.
    scaled = beta * x
    return jnp.where(scaled > threshold, x, jnp.log(1.0 + jnp.exp(scaled)) / beta)


def _sublane_multiple(itemsize):
    # (sublane, lane) tiling granularity: (8,128) f32, (16,128) bf16, (32,128) int8.
    return max(8, 32 // max(1, int(itemsize)))


def _choose_layout(n, itemsize):
    """Pick (lanes, rows, block_rows, grid_len) for a lane-dense (rows, lanes) slab.

    `n` must be a multiple of 128.  block_rows is a sublane-quantum multiple sized
    for ~_TARGET_BLOCK_BYTES per array per step; the grid is cdiv(rows, block_rows)
    and Pallas masks the partial final block, so no divisibility of rows is required.
    """
    sub = _sublane_multiple(itemsize)
    lanes = next(l for l in _LANE_CANDIDATES if n % l == 0)
    rows = n // lanes

    # Rows per step from the byte target, rounded down to a sublane multiple.
    target_rows = max(sub, (_TARGET_BLOCK_BYTES // (lanes * itemsize)) // sub * sub)

    # Arrays worth pipelining get at least _MIN_GRID_STEPS grid steps so the
    # in-DMA / compute / out-DMA stages overlap and v7x's two TCs both get work.
    if n * itemsize >= _MIN_PIPELINE_BYTES:
        cap = -(-rows // _MIN_GRID_STEPS)        # ceil(rows / MIN_GRID_STEPS)
        cap = max(sub, -(-cap // sub) * sub)     # round up to sublane multiple
        target_rows = min(target_rows, cap)

    if target_rows >= rows:
        block_rows = rows                        # single full-extent block (legal)
    else:
        block_rows = target_rows                 # multiple of sub; cdiv grid + masked tail
    grid_len = pl.cdiv(rows, block_rows)
    return lanes, rows, block_rows, grid_len


def _softplus_pallas_2d(x2d, block_rows, grid_len, beta, threshold, donate_input):
    rows, lanes = x2d.shape
    itemsize = jnp.dtype(x2d.dtype).itemsize
    tile_bytes = block_rows * lanes * itemsize
    # Double-buffered in + out (4 x tile) plus headroom; raised above the default
    # scoped limits but capped well under v7x's 64 MiB physical per-TC VMEM.
    vmem_limit = int(min(max(4 * tile_bytes + (8 << 20), 32 << 20), 48 << 20))

    kernel = functools.partial(
        _softplus_kernel, beta=float(beta), threshold=float(threshold)
    )
    return pl.pallas_call(
        kernel,
        out_shape=jax.ShapeDtypeStruct((rows, lanes), x2d.dtype),
        grid_spec=pltpu.PrefetchScalarGridSpec(
            num_scalar_prefetch=0,
            grid=(grid_len,),
            in_specs=[pl.BlockSpec((block_rows, lanes), lambda i: (i, 0))],
            out_specs=pl.BlockSpec((block_rows, lanes), lambda i: (i, 0)),
        ),
        compiler_params=pltpu.CompilerParams(
            dimension_semantics=("parallel",),
            vmem_limit_bytes=vmem_limit,
        ),
        input_output_aliases=({0: 0} if donate_input else {}),
    )(x2d)


def my_softplus(x, beta=1.0, threshold=20.0, *, donate_input=False):
    """Elementwise softplus matching MySoftplusFunction.forward (any input shape)."""
    orig_shape = x.shape
    dtype = x.dtype
    n = int(x.size)
    if n == 0:
        return x
    itemsize = jnp.dtype(dtype).itemsize

    flat = x.reshape(-1)
    n_main = (n // 128) * 128
    if n_main == 0:
        # Tiny (<128 element) input: not worth a kernel launch.
        return _softplus_xla(flat, beta, threshold).astype(dtype).reshape(orig_shape)

    main = flat if n_main == n else flat[:n_main]
    lanes, rows, block_rows, grid_len = _choose_layout(n_main, itemsize)
    x2d = main.reshape(rows, lanes)

    out2d = _softplus_pallas_2d(x2d, block_rows, grid_len, beta, threshold, donate_input)
    out_flat = out2d.reshape(-1)

    if n_main != n:
        # Sub-128-element tail: trivial XLA op, then stitch.  Only ragged shapes pay
        # the concat; lane-aligned shapes never touch this path.
        tail = flat[n_main:]
        out_tail = _softplus_xla(tail, beta, threshold).astype(dtype)
        out_flat = jnp.concatenate([out_flat, out_tail])

    return out_flat.reshape(orig_shape)


def _reference_softplus(x, beta=1.0, threshold=20.0):
    scaled = beta * x
    return jnp.where(scaled > threshold, x, jnp.log(1.0 + jnp.exp(scaled)) / beta)


if __name__ == "__main__":
    key = jax.random.PRNGKey(0)

    # Small NCHW input consistent with an activation module (exercises both branches).
    x = jax.random.normal(key, (2, 4, 16, 16), dtype=jnp.float32) * 10.0
    out = jax.block_until_ready(my_softplus(x, beta=1.0, threshold=20.0))
    ref = _reference_softplus(x, beta=1.0, threshold=20.0)
    assert out.shape == x.shape and out.dtype == x.dtype
    assert jnp.allclose(out, ref, atol=1e-5, rtol=1e-5)

    # Ragged element count (not a multiple of 128): exercises the prefix-kernel +
    # XLA-tail path and a non-default beta/threshold.
    x2 = jax.random.normal(jax.random.PRNGKey(1), (3, 5, 7, 11), dtype=jnp.float32) * 5.0
    out2 = jax.block_until_ready(my_softplus(x2, beta=2.0, threshold=10.0))
    ref2 = _reference_softplus(x2, beta=2.0, threshold=10.0)
    assert out2.shape == x2.shape and out2.dtype == x2.dtype
    assert jnp.allclose(out2, ref2, atol=1e-5, rtol=1e-5)

    # ~1 MiB input: exercises the multi-step grid with a partial (masked) final
    # sublane block (rows=65, block_rows=24 -> grid=3, last block 17 rows).
    x3 = jax.random.normal(jax.random.PRNGKey(2), (2, 4, 130, 256), dtype=jnp.float32) * 3.0
    out3 = jax.block_until_ready(my_softplus(x3, beta=1.0, threshold=20.0))
    ref3 = _reference_softplus(x3, beta=1.0, threshold=20.0)
    assert out3.shape == x3.shape and out3.dtype == x3.dtype
    assert jnp.allclose(out3, ref3, atol=1e-5, rtol=1e-5)

    print("KERNEL_OK")
</pallas_src>

<mosaic_0001>
module attributes {stable_mosaic.version = 11 : i64} {
  func.func @_softplus_kernel(%arg0: i32, %arg1: memref<1x2048xf32, #tpu.memory_space<vmem>>, %arg2: memref<1x2048xf32, #tpu.memory_space<vmem>>) attributes {dimension_semantics = [#tpu.dimension_semantics<parallel>], iteration_bounds = array<i64: 1>, scalar_prefetch = 0 : i64, scratch_operands = 0 : i64, tpu.core_type = #tpu.core_type<tc>, window_params = [{transform_indices = @transform_0, window_bounds = array<i64: 1, 2048>}, {transform_indices = @transform_1, window_bounds = array<i64: 1, 2048>}]} {
    %c0 = arith.constant 0 : index
    %c0_0 = arith.constant 0 : index
    %0 = vector.load %arg1[%c0, %c0_0] : memref<1x2048xf32, #tpu.memory_space<vmem>>, vector<1x2048xf32>
    %1 = math.exp %0 : vector<1x2048xf32>
    %cst = arith.constant 1.000000e+00 : f32
    %2 = vector.broadcast %cst : f32 to vector<1x2048xf32>
    %3 = arith.addf %2, %1 : vector<1x2048xf32>
    %4 = math.log %3 : vector<1x2048xf32>
    %cst_1 = arith.constant 2.000000e+01 : f32
    %5 = vector.broadcast %cst_1 : f32 to vector<1x2048xf32>
    %6 = arith.cmpf ogt, %0, %5 : vector<1x2048xf32>
    %7 = arith.select %6, %0, %4 : vector<1x2048xi1>, vector<1x2048xf32>
    %c0_2 = arith.constant 0 : index
    %c0_3 = arith.constant 0 : index
    %8 = vector.load %arg2[%c0_2, %c0_3] : memref<1x2048xf32, #tpu.memory_space<vmem>>, vector<1x2048xf32>
    tpu.vector_store %arg2[%c0_2, %c0_3], %7 {strides = array<i32>} : memref<1x2048xf32, #tpu.memory_space<vmem>>, vector<1x2048xf32>,
    return
  }
  func.func @transform_0(%arg0: i32) -> (i32, i32) {
    %c0_i32 = arith.constant 0 : i32
    %c0_i32_0 = arith.constant 0 : i32
    return %arg0, %c0_i32 : i32, i32
  }
  func.func @transform_1(%arg0: i32) -> (i32, i32) {
    %c0_i32 = arith.constant 0 : i32
    %c0_i32_0 = arith.constant 0 : i32
    return %arg0, %c0_i32 : i32, i32
  }
}

</mosaic_0001>

<llo_original>
// kernel: tpu_custom_call.1
$region0: #{tpu_custom_call.1}
  #allocation0 [shape = 'u32[]', space=smem, size = 0x4, offset = 0x4, fixed_abs, tag = 'smem constant byte address 0x4 - core index']
  #allocation1 [shape = 'u32[144,128]{1,0:T(1,128)}', space=vmem, size = 0x12000, scoped, tag = 'internal scratch']
  %s0 = inlined_call_operand.hbm [shape: f32[1,2048], index: 0, kind: input, shape index: {}]
  %s1 = inlined_call_operand.hbm [shape: f32[1,2048], index: 1, kind: output, shape index: {}]
  %s2 = sld [smem:[#allocation0]]
  $region18: #{tpu_custom_call.1} parent=0
    _
  %s4 = ssub.s32 1, %s2
  %s5 = scalar_select 0, %s4, %s2
  $region1: #{tpu_custom_call.1} parent=0
    #allocation2 [shape = 'u8[8192]{0}', space=vmem, size = 0x2000, scoped, tag = 'input window, operand 0, single buffered']
    #allocation3 [shape = 's32[1]{0}', space=sflag, size = 0x4, scoped, tag = 'scoped memory for tpu_custom_call.1']
    #allocation4 [shape = 's32[1]{0}', space=sflag, size = 0x4, scoped, tag = 'scoped memory for tpu_custom_call.1']
    #allocation5 [shape = 'u8[8192]{0}', space=vmem, size = 0x2000, scoped, tag = 'output window, operand 0, single buffered']
    %6 = vsyncpa [#allocation3], 0
    %7 = vsyncpa [#allocation4], 0
    // Predicated region
    $region2: #{tpu_custom_call.1} parent=1 // pred_check
      _
    $region3: #{tpu_custom_call.1} parent=1 // pred_check_branch
      %9 = sbr.rel (0) target = $region5
    $region4: #{tpu_custom_call.1} parent=1 // pred_region
      %s11 = ssub.s32 256, 256
      %12 = vsyncadd [#allocation3], %s11
      %s14 = sshll.u32 [#allocation2], 4
      %s15 = int_to_ptr.vmem [resolvable:$true] %s14
      %17 = dma.hbm_to_vmem [thread:$0]  %s0, 256, %s15, [#allocation3]
    $region5: #{tpu_custom_call.1} parent=1 // pred_fallthru
      _
    // Predicated region
    $region6: #{tpu_custom_call.1} parent=1 // pred_check
      _
    $region7: #{tpu_custom_call.1} parent=1 // pred_check_branch
      %19 = sbr.rel (0) target = $region9
    $region8: #{tpu_custom_call.1} parent=1 // pred_region
      %20 = dma.done [#allocation3], 256
    $region9: #{tpu_custom_call.1} parent=1 // pred_fallthru
      _
    %v21 = vld [vmem:[#allocation2] sm:$0xff]
    %v22 = vld [vmem:[#allocation2 + $0x8] sm:$0xff]
    %v23 = vmul.f32 %v21, 1.442695
    %v24 = vpow.pop %v23
    %v25 = vmul.f32 %v22, 1.442695
    %v26 = vpow.pop %v25
    %v27 = vadd.f32 %v24, 1.0
    %v28 = vadd.f32 %v26, 1.0
    %v29 = vlog2.pop %v27
    %v30 = vmul.f32 %v29, 0.6931472
    %v31 = vlog2.pop %v28
    %v32 = vmul.f32 %v31, 0.6931472
    %vm33 = vcmp.gt.f32.partialorder %v21, 20.0
    %vm34 = vcmp.gt.f32.partialorder %v22, 20.0
    %v35 = vsel %vm33, %v21, %v30
    %v36 = vsel %vm34, %v22, %v32
    %37 = vst [vmem:[#allocation5] sm:$0xff] %v35
    %38 = vst [vmem:[#allocation5 + $0x8] sm:$0xff] %v36
    // Predicated region
    $region10: #{tpu_custom_call.1} parent=1 // pred_check
      _
    $region11: #{tpu_custom_call.1} parent=1 // pred_check_branch
      %40 = sbr.rel (0) target = $region13
    $region12: #{tpu_custom_call.1} parent=1 // pred_region
      %s42 = ssub.s32 256, 256
      %43 = vsyncadd [#allocation4], %s42
      %s45 = sshll.u32 [#allocation5], 4
      %s46 = int_to_ptr.vmem [resolvable:$true] %s45
      %48 = dma.vmem_to_hbm [thread:$0]  %s46, 256, %s1, [#allocation4]
    $region13: #{tpu_custom_call.1} parent=1 // pred_fallthru
      _
    // Predicated region
    $region14: #{tpu_custom_call.1} parent=1 // pred_check
      _
    $region15: #{tpu_custom_call.1} parent=1 // pred_check_branch
      %50 = sbr.rel (0) target = $region17
    $region16: #{tpu_custom_call.1} parent=1 // pred_region
      %51 = dma.done [#allocation4], 256
    $region17: #{tpu_custom_call.1} parent=1 // pred_fallthru
      _
    %52 = vsyncpa [#allocation3], 1
    %53 = vsyncpa [#allocation4], 1

</llo_original>
